<compile_context>
chip_gen: v7x
topology: tpu7x:2x2x1
jax: 0.10.0
libtpu: 0.0.40
codegen_flags: <defaults>
</compile_context>

<pallas_src>
import jax
import jax.numpy as jnp
from jax import lax
from jax.experimental import pallas as pl
from jax.experimental.pallas import tpu as pltpu

EPS = 1e-5


def convbnrelu_kernel(w_ref, p_ref, gb_ref, o_ref):
    """ReLU(BatchNorm(Conv3x3(x))) on a lane-dense (Cout, N) slab.

    w_ref : (Cout, 9*Cin)  im2col-reshaped conv weight (bias dropped: it is
                           cancelled exactly by the BN mean subtraction)
    p_ref : (9*Cin, N)     im2col patch matrix, N = B*H_out*W_out on lanes
    gb_ref: (Cout, 2)      packed BN affine params: [:,0]=gamma, [:,1]=beta
    o_ref : (Cout, N)
    """
    # Single MXU matmul for the whole convolution (contraction K = 9*Cin).
    y = jnp.dot(w_ref[...], p_ref[...], preferred_element_type=jnp.float32)

    # Training-mode BatchNorm statistics (biased variance) in one pass.
    n = y.shape[1]
    inv_n = 1.0 / n
    mean = jnp.sum(y, axis=1, keepdims=True) * inv_n          # (Cout, 1)
    ex2 = jnp.sum(y * y, axis=1, keepdims=True) * inv_n       # (Cout, 1)
    var = ex2 - mean * mean

    gamma = gb_ref[:, 0:1]
    beta = gb_ref[:, 1:2]
    scale = gamma * lax.rsqrt(var + EPS)                       # EUP rsqrt
    shift = beta - mean * scale

    # Fused affine + ReLU: one pass over the lane-dense slab.
    o_ref[...] = jnp.maximum(y * scale + shift, 0.0)


def conv_bn_relu_pallas(x_nchw, params, stride=1):
    """PyTorch-equivalent forward: NCHW in, NCHW out."""
    w_hwio, b, gamma, beta = params
    del b  # conv bias is mathematically cancelled by the BN mean subtraction
    B, Cin, H, W = x_nchw.shape
    Cout = w_hwio.shape[-1]
    Ho = (H + 2 - 3) // stride + 1
    Wo = (W + 2 - 3) // stride + 1
    N = B * Ho * Wo

    # ---- layout plumbing (wrapper glue only: pad + im2col + transposes) ----
    x = jnp.transpose(x_nchw, (0, 2, 3, 1)).astype(jnp.float32)     # NHWC
    xp = jnp.pad(x, ((0, 0), (1, 1), (1, 1), (0, 0)))               # pad=1
    # P[(dy*3+dx)*Cin + c, b*Ho*Wo + h*Wo + w] = xp[b, h*s+dy, w*s+dx, c]
    taps = [xp[:, dy:dy + stride * Ho:stride, dx:dx + stride * Wo:stride, :]
            for dy in range(3) for dx in range(3)]                  # 9x(B,Ho,Wo,Cin)
    p = jnp.stack(taps, axis=0)                                     # (9,B,Ho,Wo,Cin)
    p = jnp.transpose(p, (0, 4, 1, 2, 3)).reshape(9 * Cin, N)       # (9*Cin, N)

    # HWIO (3,3,Cin,Cout) -> (Cout, 9*Cin), row order matching P.
    w_mat = jnp.transpose(w_hwio, (3, 0, 1, 2)).reshape(Cout, 9 * Cin)
    gb = jnp.stack([gamma, beta], axis=1).astype(jnp.float32)       # (Cout, 2)

    vmem = pl.BlockSpec(memory_space=pltpu.MemorySpace.VMEM)
    out = pl.pallas_call(
        convbnrelu_kernel,
        out_shape=jax.ShapeDtypeStruct((Cout, N), jnp.float32),
        in_specs=[vmem, vmem, vmem],
        out_specs=vmem,
    )(w_mat, p, gb)

    # (Cout, B*Ho*Wo) -> (B, Cout, Ho, Wo)
    return jnp.transpose(out.reshape(Cout, B, Ho, Wo), (1, 0, 2, 3))


def conv_bn_relu_ref(x_nchw, params, stride=1):
    """Pure-JAX reference (same semantics as the PyTorch module in train mode,
    including the conv bias, which BN cancels)."""
    w_hwio, b, gamma, beta = params
    x = jnp.transpose(x_nchw, (0, 2, 3, 1)).astype(jnp.float32)
    y = lax.conv_general_dilated(
        x, w_hwio, window_strides=(stride, stride), padding=((1, 1), (1, 1)),
        dimension_numbers=("NHWC", "HWIO", "NHWC")) + b.reshape(1, 1, 1, -1)
    m = y.mean(axis=(0, 1, 2), keepdims=True)
    v = ((y - m) ** 2).mean(axis=(0, 1, 2), keepdims=True)
    yn = (y - m) * lax.rsqrt(v + EPS)
    h = jnp.maximum(yn * gamma.reshape(1, 1, 1, -1) + beta.reshape(1, 1, 1, -1),
                    0.0)
    return jnp.transpose(h, (0, 3, 1, 2))


def make_params(key, cin, cout):
    k = jax.random.split(key, 4)
    # Conv weight in HWIO layout (3, 3, in, out); conv bias present (cancelled
    # by BN); BN affine params made non-trivial to exercise the fused FMA.
    w = jax.random.normal(k[0], (3, 3, cin, cout), jnp.float32) / (3.0 * cin ** 0.5)
    b = jax.random.normal(k[1], (cout,), jnp.float32) * 0.1
    gamma = 1.0 + 0.1 * jax.random.normal(k[2], (cout,), jnp.float32)
    beta = 0.1 * jax.random.normal(k[3], (cout,), jnp.float32)
    return (w, b, gamma, beta)


if __name__ == "__main__":
    key = jax.random.PRNGKey(0)
    k_x, k_p = jax.random.split(key)

    B, Cin, Cout, H, W = 2, 4, 8, 16, 16
    x = jax.random.normal(k_x, (B, Cin, H, W), jnp.float32)
    params = make_params(k_p, Cin, Cout)

    out = jax.block_until_ready(conv_bn_relu_pallas(x, params))
    ref = jax.block_until_ready(conv_bn_relu_ref(x, params))

    assert out.shape == (B, Cout, H, W), out.shape
    max_err = float(jnp.max(jnp.abs(out - ref)))
    assert max_err < 1e-3, f"mismatch vs reference: {max_err}"
    print("KERNEL_OK")
</pallas_src>

<mosaic_0001>
module attributes {stable_mosaic.version = 11 : i64} {
  func.func @convbnrelu_kernel(%arg0: memref<8x36xf32, #tpu.memory_space<vmem>>, %arg1: memref<36x512xf32, #tpu.memory_space<vmem>>, %arg2: memref<8x2xf32, #tpu.memory_space<vmem>>, %arg3: memref<8x512xf32, #tpu.memory_space<vmem>>) attributes {dimension_semantics = [], scalar_prefetch = 0 : i64, scratch_operands = 0 : i64, tpu.core_type = #tpu.core_type<tc>} {
    %c0 = arith.constant 0 : index
    %c0_0 = arith.constant 0 : index
    %0 = vector.load %arg0[%c0, %c0_0] : memref<8x36xf32, #tpu.memory_space<vmem>>, vector<8x36xf32>
    %c0_1 = arith.constant 0 : index
    %c0_2 = arith.constant 0 : index
    %1 = vector.load %arg1[%c0_1, %c0_2] : memref<36x512xf32, #tpu.memory_space<vmem>>, vector<36x512xf32>
    %cst = arith.constant dense<0.000000e+00> : vector<8x512xf32>
    %2 = tpu.matmul %0, %1, %cst {dimension_numbers = #tpu.dot_dimension_numbers<[1], [0], [0], [1], [0, 0, 1, 1], [], []>} : vector<8x36xf32>, vector<36x512xf32>, vector<8x512xf32> -> vector<8x512xf32>
    %cst_3 = arith.constant dense<0.000000e+00> : vector<8xf32>
    %3 = vector.multi_reduction <add>, %2, %cst_3 [1] : vector<8x512xf32> to vector<8xf32>
    %4 = vector.shape_cast %3 : vector<8xf32> to vector<8x1xf32>
    %cst_4 = arith.constant 0.001953125 : f32
    %5 = vector.broadcast %cst_4 : f32 to vector<8x1xf32>
    %6 = arith.mulf %4, %5 : vector<8x1xf32>
    %7 = arith.mulf %2, %2 : vector<8x512xf32>
    %cst_5 = arith.constant dense<0.000000e+00> : vector<8xf32>
    %8 = vector.multi_reduction <add>, %7, %cst_5 [1] : vector<8x512xf32> to vector<8xf32>
    %9 = vector.shape_cast %8 : vector<8xf32> to vector<8x1xf32>
    %cst_6 = arith.constant 0.001953125 : f32
    %10 = vector.broadcast %cst_6 : f32 to vector<8x1xf32>
    %11 = arith.mulf %9, %10 : vector<8x1xf32>
    %12 = arith.mulf %6, %6 : vector<8x1xf32>
    %13 = arith.subf %11, %12 : vector<8x1xf32>
    %c0_7 = arith.constant 0 : index
    %c0_8 = arith.constant 0 : index
    %14 = vector.load %arg2[%c0_7, %c0_8] : memref<8x2xf32, #tpu.memory_space<vmem>>, vector<8x1xf32>
    %c0_9 = arith.constant 0 : index
    %c1 = arith.constant 1 : index
    %15 = vector.load %arg2[%c0_9, %c1] : memref<8x2xf32, #tpu.memory_space<vmem>>, vector<8x1xf32>
    %cst_10 = arith.constant 9.99999974E-6 : f32
    %16 = vector.broadcast %cst_10 : f32 to vector<8x1xf32>
    %17 = arith.addf %13, %16 : vector<8x1xf32>
    %18 = math.rsqrt %17 : vector<8x1xf32>
    %19 = arith.mulf %14, %18 : vector<8x1xf32>
    %20 = arith.mulf %6, %19 : vector<8x1xf32>
    %21 = arith.subf %15, %20 : vector<8x1xf32>
    %22 = vector.broadcast %19 : vector<8x1xf32> to vector<8x512xf32>
    %23 = arith.mulf %2, %22 : vector<8x512xf32>
    %24 = vector.broadcast %21 : vector<8x1xf32> to vector<8x512xf32>
    %25 = arith.addf %23, %24 : vector<8x512xf32>
    %cst_11 = arith.constant 0.000000e+00 : f32
    %26 = vector.broadcast %cst_11 : f32 to vector<8x512xf32>
    %27 = arith.maximumf %25, %26 : vector<8x512xf32>
    %c0_12 = arith.constant 0 : index
    %c0_13 = arith.constant 0 : index
    %28 = vector.load %arg3[%c0_12, %c0_13] : memref<8x512xf32, #tpu.memory_space<vmem>>, vector<8x512xf32>
    tpu.vector_store %arg3[%c0_12, %c0_13], %27 {strides = array<i32>} : memref<8x512xf32, #tpu.memory_space<vmem>>, vector<8x512xf32>,
    return
  }
}

</mosaic_0001>

<llo_original>
// kernel: tpu_custom_call.1
$region0: #{tpu_custom_call.1}
  #allocation0 [shape = 'u32[]', space=smem, size = 0x4, offset = 0x4, fixed_abs, tag = 'smem constant byte address 0x4 - core index']
  #allocation1 [shape = 'u32[144,128]{1,0:T(1,128)}', space=vmem, size = 0x12000, scoped, tag = 'internal scratch']
  %s0 = inlined_call_operand.vmem [shape: f32[8,36], index: 0, kind: input, shape index: {}]
  %s1 = inlined_call_operand.hbm [shape: f32[36,512], index: 1, kind: input, shape index: {}]
  %s2 = inlined_call_operand.vmem [shape: f32[8,2], index: 2, kind: input, shape index: {}]
  %s3 = inlined_call_operand.hbm [shape: f32[8,512], index: 3, kind: output, shape index: {}]
  %s4 = sld [smem:[#allocation0]]
  $region26: #{tpu_custom_call.1} parent=0
    _
  %s6 = ssub.s32 1, %s4
  %s7 = scalar_select 0, %s6, %s4
  $region1: #{tpu_custom_call.1} parent=0
    #allocation2 [shape = 'u8[81920]{0}', space=vmem, size = 0x14000, scoped, tag = 'input window, operand 1, single buffered']
    #allocation3 [shape = 's32[1]{0}', space=sflag, size = 0x4, scoped, tag = 'scoped memory for tpu_custom_call.1']
    #allocation4 [shape = 's32[1]{0}', space=sflag, size = 0x4, scoped, tag = 'scoped memory for tpu_custom_call.1']
    #allocation5 [shape = 'u8[16384]{0}', space=vmem, size = 0x4000, scoped, tag = 'output window, operand 0, single buffered']
    %8 = vsyncpa [#allocation3], 0
    %9 = vsyncpa [#allocation4], 0
    // Predicated region
    $region2: #{tpu_custom_call.1} parent=1 // pred_check
      _
    $region3: #{tpu_custom_call.1} parent=1 // pred_check_branch
      %11 = sbr.rel (0) target = $region5
    $region4: #{tpu_custom_call.1} parent=1 // pred_region
      _
    $region5: #{tpu_custom_call.1} parent=1 // pred_fallthru
      _
    // Predicated region
    $region6: #{tpu_custom_call.1} parent=1 // pred_check
      _
    $region7: #{tpu_custom_call.1} parent=1 // pred_check_branch
      %13 = sbr.rel (0) target = $region9
    $region8: #{tpu_custom_call.1} parent=1 // pred_region
      %s15 = ssub.s32 2560, 2560
      %16 = vsyncadd [#allocation3], %s15
      %s17 = sshll.u32 [#allocation2], 4
      %s18 = int_to_ptr.vmem [resolvable:$true] %s17
      %23 = dma.hbm_to_vmem [thread:$0]  %s1, 2560, %s18, [#allocation3], 512, 512, 32
    $region9: #{tpu_custom_call.1} parent=1 // pred_fallthru
      _
    // Predicated region
    $region10: #{tpu_custom_call.1} parent=1 // pred_check
      _
    $region11: #{tpu_custom_call.1} parent=1 // pred_check_branch
      %25 = sbr.rel (0) target = $region13
    $region12: #{tpu_custom_call.1} parent=1 // pred_region
      _
    $region13: #{tpu_custom_call.1} parent=1 // pred_fallthru
      _
    // Predicated region
    $region14: #{tpu_custom_call.1} parent=1 // pred_check
      _
    $region15: #{tpu_custom_call.1} parent=1 // pred_check_branch
      %27 = sbr.rel (0) target = $region17
    $region16: #{tpu_custom_call.1} parent=1 // pred_region
      %28 = dma.done [#allocation3], 2560
    $region17: #{tpu_custom_call.1} parent=1 // pred_fallthru
      _
    %v29 = vld [vmem:[%s0] sm:$0xff]
    %v30 = vld [vmem:[#allocation2] sm:$0xff]
    %v31 = vld [vmem:[#allocation2 + $0x8] sm:$0xff]
    %v32 = vld [vmem:[#allocation2 + $0x10] sm:$0xff]
    %v33 = vld [vmem:[#allocation2 + $0x18] sm:$0xff]
    %v34 = vld [vmem:[#allocation2 + $0x20] sm:$0xff]
    %v35 = vld [vmem:[#allocation2 + $0x28] sm:$0xff]
    %v36 = vld [vmem:[#allocation2 + $0x30] sm:$0xff]
    %v37 = vld [vmem:[#allocation2 + $0x38] sm:$0xff]
    %v38 = vld [vmem:[#allocation2 + $0x40] sm:$0xff]
    %v39 = vld [vmem:[#allocation2 + $0x48] sm:$0xff]
    %v40 = vld [vmem:[#allocation2 + $0x50] sm:$0xff]
    %v41 = vld [vmem:[#allocation2 + $0x58] sm:$0xff]
    %v42 = vld [vmem:[#allocation2 + $0x60] sm:$0xff]
    %v43 = vld [vmem:[#allocation2 + $0x68] sm:$0xff]
    %v44 = vld [vmem:[#allocation2 + $0x70] sm:$0xff]
    %v45 = vld [vmem:[#allocation2 + $0x78] sm:$0xff]
    %v46 = vld [vmem:[#allocation2 + $0x80] sm:$0xf]
    %v47 = vld [vmem:[#allocation2 + $0x88] sm:$0xf]
    %v48 = vld [vmem:[#allocation2 + $0x90] sm:$0xf]
    %v49 = vld [vmem:[#allocation2 + $0x98] sm:$0xf]
    %vm50 = vcmask 293888
    %v52 = vsel %vm50, %v29, 0
    %vm54 = vcmask 1043456
    %v56 = vsel %vm54, %v46, 0
    %v59 = vsel %vm54, %v47, 0
    %v62 = vsel %vm54, %v48, 0
    %v65 = vsel %vm54, %v49, 0
    %67 = vmatprep.subr.mxu0 %v31
    %68 = vmatpush1.msra.mxu0 %v30
    %69 = vmatprep.subr.mxu0 %v35
    %70 = vmatpush1.msra.mxu0 %v34
    %71 = vmatprep.subr.mxu0 %v39
    %72 = vmatpush1.msra.mxu0 %v38
    %73 = vmatprep.subr.mxu0 %v43
    %74 = vmatpush1.msra.mxu0 %v42
    %75 = vmatprep.subr.mxu0 %v59
    %76 = vmatpush1.msra.mxu0 %v56
    %77 = vmatprep.subr.mxu0 0.0
    %78 = vmatpush1.msra.mxu0 0.0
    %79 = vmatprep.subr.mxu0 0.0
    %80 = vmatpush1.msra.mxu0 0.0
    %81 = vmatprep.subr.mxu0 0.0
    %82 = vmatpush1.msra.mxu0 0.0
    %83 = vmatprep.subr.mxu0 0.0
    %84 = vmatpush1.msra.mxu0 0.0
    %85 = vmatprep.subr.mxu0 0.0
    %86 = vmatpush1.msra.mxu0 0.0
    %87 = vmatprep.subr.mxu0 0.0
    %88 = vmatpush1.msra.mxu0 0.0
    %89 = vmatprep.subr.mxu0 0.0
    %90 = vmatpush1.msra.mxu0 0.0
    %91 = vmatprep.subr.mxu0 0.0
    %92 = vmatpush1.msra.mxu0 0.0
    %93 = vmatprep.subr.mxu0 0.0
    %94 = vmatpush1.msra.mxu0 0.0
    %95 = vmatprep.subr.mxu0 0.0
    %96 = vmatpush1.msra.mxu0 0.0
    %97 = vmatprep.subr.mxu0 0.0
    %98 = vmatpush1.msra.mxu0 0.0
    %99 = vmatprep.subr.mxu0 0.0
    %100 = vmatpush1.msra.mxu0 0.0
    %101 = vmatprep.subr.mxu0 0.0
    %102 = vmatpush1.msra.mxu0 0.0
    %103 = vmatprep.subr.mxu0 0.0
    %104 = vmatpush1.msra.mxu0 0.0
    %105 = vmatprep.subr.mxu0 0.0
    %106 = vmatpush1.msra.mxu0 0.0
    %107 = vmatprep.subr.mxu0 0.0
    %108 = vmatpush1.msra.mxu0 0.0
    %109 = vmatprep.subr.mxu0 0.0
    %110 = vmatpush1.msra.mxu0 0.0
    %111 = vmatprep.subr.mxu0 0.0
    %112 = vmatpush1.msra.mxu0 0.0
    %113 = vmatprep.subr.mxu0 0.0
    %114 = vmatpush1.msra.mxu0 0.0
    %115 = vmatprep.subr.mxu0 0.0
    %116 = vmatpush1.msra.mxu0 0.0
    %117 = vmatprep.subr.mxu0 0.0
    %118 = vmatpush1.msra.mxu0 0.0
    %119 = vmatprep.subr.mxu0 0.0
    %120 = vmatpush1.msra.mxu0 0.0
    %121 = vmatprep.subr.mxu0 0.0
    %122 = vmatpush1.msra.mxu0 0.0
    %123 = vmatprep.subr.mxu0 0.0
    %124 = vmatpush1.msra.mxu0 0.0
    %125 = vmatprep.subr.mxu0 0.0
    %126 = vmatpush1.msra.mxu0 0.0
    %127 = vmatprep.subr.mxu0 0.0
    %128 = vmatpush1.msra.mxu0 0.0
    %129 = vmatprep.subr.mxu0 0.0
    %130 = vmatpush1.msra.mxu0 0.0
    %131 = vmatprep.mubr.f32.mxu0 0.0
    %132 = vmatmul.mubr.f32.gmra.mrb[0].mxu0 %v52
    %v133 = vpop.f32.mrb[0].mxu0
    %v134 = vadd.f32 0.0, %v133
    %v135 = vpop.f32.mrb[0].mxu0
    %v136 = vadd.f32 0.0, %v135
    %137 = vdwg.mxu0
    %138 = vmatprep.subr.mxu0 %v33
    %139 = vmatpush1.msra.mxu0 %v32
    %140 = vmatprep.subr.mxu0 %v37
    %141 = vmatpush1.msra.mxu0 %v36
    %142 = vmatprep.subr.mxu0 %v41
    %143 = vmatpush1.msra.mxu0 %v40
    %144 = vmatprep.subr.mxu0 %v45
    %145 = vmatpush1.msra.mxu0 %v44
    %146 = vmatprep.subr.mxu0 %v65
    %147 = vmatpush1.msra.mxu0 %v62
    %148 = vmatprep.subr.mxu0 0.0
    %149 = vmatpush1.msra.mxu0 0.0
    %150 = vmatprep.subr.mxu0 0.0
    %151 = vmatpush1.msra.mxu0 0.0
    %152 = vmatprep.subr.mxu0 0.0
    %153 = vmatpush1.msra.mxu0 0.0
    %154 = vmatprep.subr.mxu0 0.0
    %155 = vmatpush1.msra.mxu0 0.0
    %156 = vmatprep.subr.mxu0 0.0
    %157 = vmatpush1.msra.mxu0 0.0
    %158 = vmatprep.subr.mxu0 0.0
    %159 = vmatpush1.msra.mxu0 0.0
    %160 = vmatprep.subr.mxu0 0.0
    %161 = vmatpush1.msra.mxu0 0.0
    %162 = vmatprep.subr.mxu0 0.0
    %163 = vmatpush1.msra.mxu0 0.0
    %164 = vmatprep.subr.mxu0 0.0
    %165 = vmatpush1.msra.mxu0 0.0
    %166 = vmatprep.subr.mxu0 0.0
    %167 = vmatpush1.msra.mxu0 0.0
    %168 = vmatprep.subr.mxu0 0.0
    %169 = vmatpush1.msra.mxu0 0.0
    %170 = vmatprep.subr.mxu0 0.0
    %171 = vmatpush1.msra.mxu0 0.0
    %172 = vmatprep.subr.mxu0 0.0
    %173 = vmatpush1.msra.mxu0 0.0
    %174 = vmatprep.subr.mxu0 0.0
    %175 = vmatpush1.msra.mxu0 0.0
    %176 = vmatprep.subr.mxu0 0.0
    %177 = vmatpush1.msra.mxu0 0.0
    %178 = vmatprep.subr.mxu0 0.0
    %179 = vmatpush1.msra.mxu0 0.0
    %180 = vmatprep.subr.mxu0 0.0
    %181 = vmatpush1.msra.mxu0 0.0
    %182 = vmatprep.subr.mxu0 0.0
    %183 = vmatpush1.msra.mxu0 0.0
    %184 = vmatprep.subr.mxu0 0.0
    %185 = vmatpush1.msra.mxu0 0.0
    %186 = vmatprep.subr.mxu0 0.0
    %187 = vmatpush1.msra.mxu0 0.0
    %188 = vmatprep.subr.mxu0 0.0
    %189 = vmatpush1.msra.mxu0 0.0
    %190 = vmatprep.subr.mxu0 0.0
    %191 = vmatpush1.msra.mxu0 0.0
    %192 = vmatprep.subr.mxu0 0.0
    %193 = vmatpush1.msra.mxu0 0.0
    %194 = vmatprep.subr.mxu0 0.0
    %195 = vmatpush1.msra.mxu0 0.0
    %196 = vmatprep.subr.mxu0 0.0
    %197 = vmatpush1.msra.mxu0 0.0
    %198 = vmatprep.subr.mxu0 0.0
    %199 = vmatpush1.msra.mxu0 0.0
    %200 = vmatprep.subr.mxu0 0.0
    %201 = vmatpush1.msra.mxu0 0.0
    %202 = vmatprep.mubr.f32.mxu0 0.0
    %203 = vmatmul.mubr.f32.gmra.mrb[0].mxu0 %v52
    %v204 = vpop.f32.mrb[0].mxu0
    %v205 = vadd.f32 0.0, %v204
    %v206 = vpop.f32.mrb[0].mxu0
    %v207 = vadd.f32 0.0, %v206
    %208 = vdwg.mxu0
    %v209 = vadd.f32 %v134, %v136
    %v210 = vadd.f32 %v209, %v205
    %v211 = vadd.f32 %v210, %v207
    %212 = vadd.xlane.f32.xlu0 %v211
    %v213 = vpop.xlane.xlu0 %212
    %v214 = vmul.f32 %v213, 0.001953125
    %v215 = vmul.f32 %v134, %v134
    %v216 = vmul.f32 %v136, %v136
    %v217 = vmul.f32 %v205, %v205
    %v218 = vmul.f32 %v207, %v207
    %v219 = vadd.f32 %v215, %v216
    %v220 = vadd.f32 %v219, %v217
    %v221 = vadd.f32 %v220, %v218
    %222 = vadd.xlane.f32.xlu0 %v221
    %v223 = vpop.xlane.xlu0 %222
    %v224 = vmul.f32 %v223, 0.001953125
    %v225 = vmul.f32 %v214, %v214
    %v226 = vsub.f32 %v224, %v225
    %v227 = vld [vmem:[%s2] sm:$0xff]
    %v228 = vadd.f32 %v226, 1e-05
    %v229 = vrsqrt.pop %v228
    %v230 = vmul.f32 %v227, %v229
    %v231 = vmul.f32 %v214, %v230
    %233 = vrot.lane.b32.xlu0 %v231, 1
    %v234 = vpop.permute.xlu0 %233
    %v236 = vsub.f32 %v227, %v234
    %238 = vset.pattern.permute.xlu0 0
    %239 = vperm.xlu0 %238, %v230
    %v240 = vpop.permute.xlu0 %239
    %v242 = vmul.f32 %v134, %v240
    %v243 = vmul.f32 %v136, %v240
    %v244 = vmul.f32 %v205, %v240
    %v245 = vmul.f32 %v207, %v240
    %247 = vset.pattern.permute.xlu0 1
    %248 = vperm.xlu0 %247, %v236
    %v249 = vpop.permute.xlu0 %248
    %v251 = vadd.f32 %v242, %v249
    %v252 = vadd.f32 %v243, %v249
    %v253 = vadd.f32 %v244, %v249
    %v254 = vadd.f32 %v245, %v249
    %v255 = vmax.f32 %v251, 0.0
    %v256 = vmax.f32 %v252, 0.0
    %v257 = vmax.f32 %v253, 0.0
    %v258 = vmax.f32 %v254, 0.0
    %259 = vst [vmem:[#allocation5] sm:$0xff] %v255
    %260 = vst [vmem:[#allocation5 + $0x8] sm:$0xff] %v256
    %261 = vst [vmem:[#allocation5 + $0x10] sm:$0xff] %v257
    %262 = vst [vmem:[#allocation5 + $0x18] sm:$0xff] %v258
    // Predicated region
    $region18: #{tpu_custom_call.1} parent=1 // pred_check
      _
    $region19: #{tpu_custom_call.1} parent=1 // pred_check_branch
      %264 = sbr.rel (0) target = $region21
    $region20: #{tpu_custom_call.1} parent=1 // pred_region
      %s266 = ssub.s32 512, 512
      %267 = vsyncadd [#allocation4], %s266
      %s269 = sshll.u32 [#allocation5], 4
      %s270 = int_to_ptr.vmem [resolvable:$true] %s269
      %272 = dma.vmem_to_hbm [thread:$0]  %s270, 512, %s3, [#allocation4]
    $region21: #{tpu_custom_call.1} parent=1 // pred_fallthru
      _
    // Predicated region
    $region22: #{tpu_custom_call.1} parent=1 // pred_check
      _
    $region23: #{tpu_custom_call.1} parent=1 // pred_check_branch
      %274 = sbr.rel (0) target = $region25
    $region24: #{tpu_custom_call.1} parent=1 // pred_region
      %275 = dma.done [#allocation4], 512
    $region25: #{tpu_custom_call.1} parent=1 // pred_fallthru
      _
    %276 = vsyncpa [#allocation3], 1
    %277 = vsyncpa [#allocation4], 1

</llo_original>
